<compile_context>
chip_gen: v5e
topology: v5e:2x2
jax: 0.10.0
libtpu: 0.0.40
codegen_flags: <defaults>
</compile_context>

<pallas_src>
import jax
import jax.numpy as jnp
from jax.experimental import pallas as pl
from jax.experimental.pallas import tpu as pltpu

LN_EPS = 1e-12


# ------------------------------ Pallas kernel ---------------------------------
def bert_output_kernel(x_ref, w_ref, b_ref, res_ref, g_ref, be_ref, o_ref):
    # x_ref:   (TM, I)  native dtype  -> cast to bf16 in VMEM for the MXU
    # w_ref:   (I,  H)  bf16          VMEM-resident dense weight
    # b_ref:   (1,  H)  f32           dense bias
    # res_ref: (TM, H)  native dtype  residual (input_tensor) tile
    # g_ref / be_ref: (1, H) f32      LayerNorm gamma / beta
    # o_ref:   (TM, H)  native dtype  output tile
    x = x_ref[...].astype(jnp.bfloat16)
    y = jnp.dot(x, w_ref[...], preferred_element_type=jnp.float32)
    # TODO(synk): dropout is identity here (inference semantics).
    y = y + b_ref[...] + res_ref[...].astype(jnp.float32)

    # TF-style LayerNorm (epsilon inside the sqrt); one-pass variance in f32.
    u = jnp.mean(y, axis=-1, keepdims=True)
    var = jnp.maximum(jnp.mean(y * y, axis=-1, keepdims=True) - u * u, 0.0)
    inv = jax.lax.rsqrt(var + LN_EPS)            # EUP, off the VALU hot path
    o_ref[...] = (g_ref[...] * ((y - u) * inv) + be_ref[...]).astype(o_ref.dtype)


# ------------------------------ helpers ----------------------------------------
def _round_up(x, m):
    return ((x + m - 1) // m) * m


# ------------------------------ Pallas wrapper ----------------------------------
def bert_output_pallas(hidden_states, input_tensor, w, b, gamma, beta):
    B, S, I = hidden_states.shape
    H = input_tensor.shape[-1]
    M = B * S
    out_dtype = input_tensor.dtype

    x = hidden_states.reshape(M, I)
    res = input_tensor.reshape(M, H)
    # Weight cast is at most one pass per call (hoist out of the per-call path
    # in a real model); activations are cast in-kernel, so no extra HBM pass.
    wb = w if w.dtype == jnp.bfloat16 else w.astype(jnp.bfloat16)
    b2 = b.reshape(1, H).astype(jnp.float32)
    g2 = gamma.reshape(1, H).astype(jnp.float32)
    be2 = beta.reshape(1, H).astype(jnp.float32)

    # Row tile over the flattened B*S axis; pad rows so the grid divides evenly.
    TM = 256 if M >= 256 else _round_up(M, 16)   # 16 = bf16 rows per vreg
    M_pad = _round_up(M, TM)
    if M_pad != M:
        x = jnp.pad(x, ((0, M_pad - M), (0, 0)))
        res = jnp.pad(res, ((0, M_pad - M), (0, 0)))

    grid = (M_pad // TM,)

    # VMEM plan (2x for double buffering), clamped to fit v7x's 64 MiB per TC.
    def _esz(dt):
        return jnp.dtype(dt).itemsize

    need = 2 * (TM * I * _esz(x.dtype)          # activation tile
                + I * H * 2                      # resident bf16 weight
                + TM * H * _esz(res.dtype)       # residual tile
                + TM * H * _esz(out_dtype)       # output tile
                + 3 * H * 4)                     # bias / gamma / beta
    vmem_limit = int(min(max(need + (4 << 20), 32 << 20), 56 << 20))
    # TODO(synk): if I*H (bf16) ever exceeds ~24 MiB (beyond BERT sizes), fall
    # back to a K-tiled weight with a trailing "arbitrary" reduction grid axis.

    out = pl.pallas_call(
        bert_output_kernel,
        out_shape=jax.ShapeDtypeStruct((M_pad, H), out_dtype),
        grid_spec=pltpu.PrefetchScalarGridSpec(
            num_scalar_prefetch=0,
            grid=grid,
            in_specs=[
                pl.BlockSpec((TM, I), lambda m: (m, 0)),   # hidden_states tile
                pl.BlockSpec((I, H), lambda m: (0, 0)),    # resident dense weight
                pl.BlockSpec((1, H), lambda m: (0, 0)),    # dense bias
                pl.BlockSpec((TM, H), lambda m: (m, 0)),   # residual tile
                pl.BlockSpec((1, H), lambda m: (0, 0)),    # gamma
                pl.BlockSpec((1, H), lambda m: (0, 0)),    # beta
            ],
            out_specs=pl.BlockSpec((TM, H), lambda m: (m, 0)),
        ),
        compiler_params=pltpu.CompilerParams(
            dimension_semantics=("parallel",),
            vmem_limit_bytes=vmem_limit,
        ),
    )(x, wb, b2, res, g2, be2)

    return out[:M].reshape(B, S, H)


# ---------------------------- pure-JAX reference --------------------------------
def bert_output_ref(hidden_states, input_tensor, w, b, gamma, beta):
    y = jnp.einsum('bsi,ih->bsh', hidden_states, w) + b
    y = y + input_tensor
    u = jnp.mean(y, axis=-1, keepdims=True)
    s = jnp.mean((y - u) ** 2, axis=-1, keepdims=True)
    return gamma * ((y - u) / jnp.sqrt(s + LN_EPS)) + beta


# ----------------------------------- main ----------------------------------------
if __name__ == "__main__":
    # small BertConfig slice: batch=2, seq=8, hidden=32, intermediate=64
    B, S, H, I = 2, 8, 32, 64

    key = jax.random.PRNGKey(0)
    k1, k2, k3, k4, k5, k6 = jax.random.split(key, 6)

    hidden_states = jax.random.normal(k1, (B, S, I), jnp.float32)   # FFN intermediate
    input_tensor = jax.random.normal(k2, (B, S, H), jnp.float32)    # residual branch
    w = (0.02 * jax.random.normal(k3, (I, H))).astype(jnp.float32)
    b = (0.02 * jax.random.normal(k4, (H,))).astype(jnp.float32)
    gamma = (1.0 + 0.1 * jax.random.normal(k5, (H,))).astype(jnp.float32)
    beta = (0.1 * jax.random.normal(k6, (H,))).astype(jnp.float32)

    out = bert_output_pallas(hidden_states, input_tensor, w, b, gamma, beta)
    jax.block_until_ready(out)

    ref = bert_output_ref(hidden_states, input_tensor, w, b, gamma, beta)
    assert out.shape == (B, S, H)
    assert out.dtype == input_tensor.dtype
    # bf16 MXU operands with f32 accumulation -> relaxed tolerance vs f32 ref.
    assert jnp.allclose(out, ref, atol=2e-2, rtol=2e-2), "BERTOutput mismatch"

    print("KERNEL_OK")
</pallas_src>

<mosaic_0001>
module attributes {stable_mosaic.version = 11 : i64} {
  func.func @bert_output_kernel(%arg0: i32, %arg1: memref<16x64xf32, #tpu.memory_space<vmem>>, %arg2: memref<64x32xbf16, #tpu.memory_space<vmem>>, %arg3: memref<1x32xf32, #tpu.memory_space<vmem>>, %arg4: memref<16x32xf32, #tpu.memory_space<vmem>>, %arg5: memref<1x32xf32, #tpu.memory_space<vmem>>, %arg6: memref<1x32xf32, #tpu.memory_space<vmem>>, %arg7: memref<16x32xf32, #tpu.memory_space<vmem>>) attributes {dimension_semantics = [#tpu.dimension_semantics<parallel>], iteration_bounds = array<i64: 1>, scalar_prefetch = 0 : i64, scratch_operands = 0 : i64, tpu.core_type = #tpu.core_type<tc>, window_params = [{transform_indices = @transform_0, window_bounds = array<i64: 16, 64>}, {pipeline_mode = #tpu.pipeline_mode<synchronous>, transform_indices = @transform_1, window_bounds = array<i64: 64, 32>}, {pipeline_mode = #tpu.pipeline_mode<synchronous>, transform_indices = @transform_2, window_bounds = array<i64: 1, 32>}, {transform_indices = @transform_3, window_bounds = array<i64: 16, 32>}, {pipeline_mode = #tpu.pipeline_mode<synchronous>, transform_indices = @transform_4, window_bounds = array<i64: 1, 32>}, {pipeline_mode = #tpu.pipeline_mode<synchronous>, transform_indices = @transform_5, window_bounds = array<i64: 1, 32>}, {transform_indices = @transform_6, window_bounds = array<i64: 16, 32>}]} {
    %c0 = arith.constant 0 : index
    %c0_0 = arith.constant 0 : index
    %0 = vector.load %arg1[%c0, %c0_0] : memref<16x64xf32, #tpu.memory_space<vmem>>, vector<16x64xf32>
    %1 = arith.truncf %0 : vector<16x64xf32> to vector<16x64xbf16>
    %c0_1 = arith.constant 0 : index
    %c0_2 = arith.constant 0 : index
    %2 = vector.load %arg2[%c0_1, %c0_2] : memref<64x32xbf16, #tpu.memory_space<vmem>>, vector<64x32xbf16>
    %cst = arith.constant dense<0.000000e+00> : vector<16x32xf32>
    %3 = tpu.matmul %1, %2, %cst {dimension_numbers = #tpu.dot_dimension_numbers<[1], [0], [0], [1], [0, 0, 1, 1], [], []>} : vector<16x64xbf16>, vector<64x32xbf16>, vector<16x32xf32> -> vector<16x32xf32>
    %c0_3 = arith.constant 0 : index
    %c0_4 = arith.constant 0 : index
    %4 = vector.load %arg3[%c0_3, %c0_4] : memref<1x32xf32, #tpu.memory_space<vmem>>, vector<1x32xf32>
    %5 = vector.broadcast %4 : vector<1x32xf32> to vector<16x32xf32>
    %6 = arith.addf %3, %5 : vector<16x32xf32>
    %c0_5 = arith.constant 0 : index
    %c0_6 = arith.constant 0 : index
    %7 = vector.load %arg4[%c0_5, %c0_6] : memref<16x32xf32, #tpu.memory_space<vmem>>, vector<16x32xf32>
    %8 = arith.addf %6, %7 : vector<16x32xf32>
    %cst_7 = arith.constant dense<0.000000e+00> : vector<16xf32>
    %9 = vector.multi_reduction <add>, %8, %cst_7 [1] : vector<16x32xf32> to vector<16xf32>
    %10 = vector.shape_cast %9 : vector<16xf32> to vector<16x1xf32>
    %cst_8 = arith.constant 3.200000e+01 : f32
    %11 = vector.broadcast %cst_8 : f32 to vector<16x1xf32>
    %12 = arith.divf %10, %11 : vector<16x1xf32>
    %13 = arith.mulf %8, %8 : vector<16x32xf32>
    %cst_9 = arith.constant dense<0.000000e+00> : vector<16xf32>
    %14 = vector.multi_reduction <add>, %13, %cst_9 [1] : vector<16x32xf32> to vector<16xf32>
    %15 = vector.shape_cast %14 : vector<16xf32> to vector<16x1xf32>
    %cst_10 = arith.constant 3.200000e+01 : f32
    %16 = vector.broadcast %cst_10 : f32 to vector<16x1xf32>
    %17 = arith.divf %15, %16 : vector<16x1xf32>
    %18 = arith.mulf %12, %12 : vector<16x1xf32>
    %19 = arith.subf %17, %18 : vector<16x1xf32>
    %cst_11 = arith.constant 0.000000e+00 : f32
    %20 = vector.broadcast %cst_11 : f32 to vector<16x1xf32>
    %21 = arith.maximumf %19, %20 : vector<16x1xf32>
    %cst_12 = arith.constant 9.99999996E-13 : f32
    %22 = vector.broadcast %cst_12 : f32 to vector<16x1xf32>
    %23 = arith.addf %21, %22 : vector<16x1xf32>
    %24 = math.rsqrt %23 : vector<16x1xf32>
    %c0_13 = arith.constant 0 : index
    %c0_14 = arith.constant 0 : index
    %25 = vector.load %arg5[%c0_13, %c0_14] : memref<1x32xf32, #tpu.memory_space<vmem>>, vector<1x32xf32>
    %26 = vector.broadcast %12 : vector<16x1xf32> to vector<16x32xf32>
    %27 = arith.subf %8, %26 : vector<16x32xf32>
    %28 = vector.broadcast %24 : vector<16x1xf32> to vector<16x32xf32>
    %29 = arith.mulf %27, %28 : vector<16x32xf32>
    %30 = vector.broadcast %25 : vector<1x32xf32> to vector<16x32xf32>
    %31 = arith.mulf %30, %29 : vector<16x32xf32>
    %c0_15 = arith.constant 0 : index
    %c0_16 = arith.constant 0 : index
    %32 = vector.load %arg6[%c0_15, %c0_16] : memref<1x32xf32, #tpu.memory_space<vmem>>, vector<1x32xf32>
    %33 = vector.broadcast %32 : vector<1x32xf32> to vector<16x32xf32>
    %34 = arith.addf %31, %33 : vector<16x32xf32>
    %c0_17 = arith.constant 0 : index
    %c0_18 = arith.constant 0 : index
    %35 = vector.load %arg7[%c0_17, %c0_18] : memref<16x32xf32, #tpu.memory_space<vmem>>, vector<16x32xf32>
    tpu.vector_store %arg7[%c0_17, %c0_18], %34 {strides = array<i32>} : memref<16x32xf32, #tpu.memory_space<vmem>>, vector<16x32xf32>,
    return
  }
  func.func @transform_0(%arg0: i32) -> (i32, i32) {
    %c0_i32 = arith.constant 0 : i32
    %c0_i32_0 = arith.constant 0 : i32
    return %arg0, %c0_i32 : i32, i32
  }
  func.func @transform_1(%arg0: i32) -> (i32, i32) {
    %c0_i32 = arith.constant 0 : i32
    %c0_i32_0 = arith.constant 0 : i32
    %c0_i32_1 = arith.constant 0 : i32
    return %c0_i32, %c0_i32_0 : i32, i32
  }
  func.func @transform_2(%arg0: i32) -> (i32, i32) {
    %c0_i32 = arith.constant 0 : i32
    %c0_i32_0 = arith.constant 0 : i32
    %c0_i32_1 = arith.constant 0 : i32
    return %c0_i32, %c0_i32_0 : i32, i32
  }
  func.func @transform_3(%arg0: i32) -> (i32, i32) {
    %c0_i32 = arith.constant 0 : i32
    %c0_i32_0 = arith.constant 0 : i32
    return %arg0, %c0_i32 : i32, i32
  }
  func.func @transform_4(%arg0: i32) -> (i32, i32) {
    %c0_i32 = arith.constant 0 : i32
    %c0_i32_0 = arith.constant 0 : i32
    %c0_i32_1 = arith.constant 0 : i32
    return %c0_i32, %c0_i32_0 : i32, i32
  }
  func.func @transform_5(%arg0: i32) -> (i32, i32) {
    %c0_i32 = arith.constant 0 : i32
    %c0_i32_0 = arith.constant 0 : i32
    %c0_i32_1 = arith.constant 0 : i32
    return %c0_i32, %c0_i32_0 : i32, i32
  }
  func.func @transform_6(%arg0: i32) -> (i32, i32) {
    %c0_i32 = arith.constant 0 : i32
    %c0_i32_0 = arith.constant 0 : i32
    return %arg0, %c0_i32 : i32, i32
  }
}

</mosaic_0001>

<llo_original>
// kernel: tpu_custom_call.1
$region0: #{tpu_custom_call.1}
  #allocation0 [shape = 'u32[]', space=smem, size = 0x4, offset = 0x4, fixed_abs, tag = 'smem constant byte address 0x4 - core index']
  #allocation1 [shape = 'u32[72,128]{1,0:T(1,128)}', space=vmem, size = 0x9000, scoped, tag = 'internal scratch']
  %s0 = inlined_call_operand.vmem [shape: f32[16,64], index: 0, kind: input, shape index: {}]
  %s1 = inlined_call_operand.vmem [shape: bf16[64,32], index: 1, kind: input, shape index: {}]
  %s2 = inlined_call_operand.vmem [shape: f32[1,32], index: 2, kind: input, shape index: {}]
  %s3 = inlined_call_operand.vmem [shape: f32[16,32], index: 3, kind: input, shape index: {}]
  %s4 = inlined_call_operand.vmem [shape: f32[1,32], index: 4, kind: input, shape index: {}]
  %s5 = inlined_call_operand.vmem [shape: f32[1,32], index: 5, kind: input, shape index: {}]
  %s6 = inlined_call_operand.hbm [shape: f32[16,32], index: 6, kind: output, shape index: {}]
  %s7 = sld [smem:[#allocation0]]
  $region34: #{tpu_custom_call.1} parent=0
    _
  %s9 = ssub.s32 1, %s7
  %s10 = scalar_select 0, %s9, %s7
  $region1: #{tpu_custom_call.1} parent=0
    #allocation2 [shape = 'u8[8192]{0}', space=vmem, size = 0x2000, scoped, tag = 'output window, operand 0, single buffered']
    #allocation3 [shape = 's32[1]{0}', space=sflag, size = 0x4, scoped, tag = 'scoped memory for tpu_custom_call.1']
    %11 = vsyncpa [#allocation3], 0
    // Predicated region
    $region2: #{tpu_custom_call.1} parent=1 // pred_check
      _
    $region3: #{tpu_custom_call.1} parent=1 // pred_check_branch
      %13 = sbr.rel (0) target = $region5
    $region4: #{tpu_custom_call.1} parent=1 // pred_region
      _
    $region5: #{tpu_custom_call.1} parent=1 // pred_fallthru
      _
    // Predicated region
    $region6: #{tpu_custom_call.1} parent=1 // pred_check
      _
    $region7: #{tpu_custom_call.1} parent=1 // pred_check_branch
      %15 = sbr.rel (0) target = $region9
    $region8: #{tpu_custom_call.1} parent=1 // pred_region
      _
    $region9: #{tpu_custom_call.1} parent=1 // pred_fallthru
      _
    // Predicated region
    $region10: #{tpu_custom_call.1} parent=1 // pred_check
      _
    $region11: #{tpu_custom_call.1} parent=1 // pred_check_branch
      %17 = sbr.rel (0) target = $region13
    $region12: #{tpu_custom_call.1} parent=1 // pred_region
      _
    $region13: #{tpu_custom_call.1} parent=1 // pred_fallthru
      _
    // Predicated region
    $region14: #{tpu_custom_call.1} parent=1 // pred_check
      _
    $region15: #{tpu_custom_call.1} parent=1 // pred_check_branch
      %19 = sbr.rel (0) target = $region17
    $region16: #{tpu_custom_call.1} parent=1 // pred_region
      _
    $region17: #{tpu_custom_call.1} parent=1 // pred_fallthru
      _
    // Predicated region
    $region18: #{tpu_custom_call.1} parent=1 // pred_check
      _
    $region19: #{tpu_custom_call.1} parent=1 // pred_check_branch
      %21 = sbr.rel (0) target = $region21
    $region20: #{tpu_custom_call.1} parent=1 // pred_region
      _
    $region21: #{tpu_custom_call.1} parent=1 // pred_fallthru
      _
    // Predicated region
    $region22: #{tpu_custom_call.1} parent=1 // pred_check
      _
    $region23: #{tpu_custom_call.1} parent=1 // pred_check_branch
      %23 = sbr.rel (0) target = $region25
    $region24: #{tpu_custom_call.1} parent=1 // pred_region
      _
    $region25: #{tpu_custom_call.1} parent=1 // pred_fallthru
      _
    %v25 = vld [vmem:[%s0] sm:$0xff]
    %v26 = vld [vmem:[%s0 + $0x8] sm:$0xff]
    %v27 = vpack.c.bf16 %v26, %v25
    %v28 = vld [vmem:[%s1] sm:$0xf]
    %v29 = vld [vmem:[%s1 + $0x4] sm:$0xf]
    %v30 = vld [vmem:[%s1 + $0x8] sm:$0xf]
    %v31 = vld [vmem:[%s1 + $0xc] sm:$0xf]
    %v32 = vld [vmem:[%s1 + $0x10] sm:$0xf]
    %v33 = vld [vmem:[%s1 + $0x14] sm:$0xf]
    %v34 = vld [vmem:[%s1 + $0x18] sm:$0xf]
    %v35 = vld [vmem:[%s1 + $0x1c] sm:$0xf]
    %v36 = vld [vmem:[%s2] sm:$0x1]
    %v38 = vperm.slane %v36, 0
    %v48 = vunpack.c.l.b16 %v28
    %v49 = vunpack.c.l.b16 %v29
    %v50 = vunpack.c.l.b16 %v30
    %v51 = vunpack.c.l.b16 %v31
    %v52 = vunpack.c.l.b16 %v32
    %v53 = vunpack.c.l.b16 %v33
    %v54 = vunpack.c.l.b16 %v34
    %v55 = vunpack.c.l.b16 %v35
    %v56 = vpack.c.b16 %v49, %v48
    %v57 = vpack.c.b16 %v51, %v50
    %v58 = vpack.c.b16 %v53, %v52
    %v59 = vpack.c.b16 %v55, %v54
    %vm64 = vcmask 523264
    %v66 = vsel %vm64, %v27, 0
    %68 = vmatpush.bf16.msra.mxu0 0
    %69 = vmatpush.bf16.msra.mxu0 0
    %70 = vmatpush.bf16.msra.mxu0 0
    %71 = vmatpush.bf16.msra.mxu0 0
    %72 = vmatpush.bf16.msra.mxu0 %v59
    %73 = vmatpush.bf16.msra.mxu0 %v58
    %74 = vmatpush.bf16.msra.mxu0 %v57
    %75 = vmatpush.bf16.msra.mxu0 %v56
    %76 = vmatmul.bf16.gmra.mxu0 %v66
    %v77 = vpop.f32.mrf.mxu0
    %v78 = vadd.f32 %v38, %v77
    %v79 = vpop.f32.mrf.mxu0
    %v80 = vadd.f32 %v38, %v79
    %81 = vdwg.mxu0
    %v82 = vld [vmem:[%s3] sm:$0xff]
    %v83 = vld [vmem:[%s3 + $0x8] sm:$0xff]
    %v84 = vadd.f32 %v78, %v82
    %v85 = vadd.f32 %v80, %v83
    %vm86 = vcmask 261120
    %v87 = vsel %vm86, %v84, 0.0
    %88 = vadd.xlane.f32.xlu0 %v87
    %v89 = vpop.xlane.xlu0 %88
    %v90 = vsel %vm86, %v85, 0.0
    %91 = vadd.xlane.f32.xlu0 %v90
    %v92 = vpop.xlane.xlu0 %91
    %v93 = vrcp.pop 32.0
    %v94 = vmul.f32 32.0, %v93
    %v95 = vsub.f32 1.0, %v94
    %v96 = vmul.f32 %v93, %v95
    %v97 = vadd.f32 %v93, %v96
    %vm98 = vweird.f32 %v93
    %v99 = vsel %vm98, %v93, %v97
    %v100 = vmul.f32 %v89, %v99
    %v101 = vmul.f32 %v92, %v99
    %v102 = vmul.f32 %v84, %v84
    %v103 = vmul.f32 %v85, %v85
    %v104 = vsel %vm86, %v102, 0.0
    %105 = vadd.xlane.f32.xlu0 %v104
    %v106 = vpop.xlane.xlu0 %105
    %v107 = vsel %vm86, %v103, 0.0
    %108 = vadd.xlane.f32.xlu0 %v107
    %v109 = vpop.xlane.xlu0 %108
    %v110 = vmul.f32 %v106, %v99
    %v111 = vmul.f32 %v109, %v99
    %v112 = vmul.f32 %v100, %v100
    %v113 = vmul.f32 %v101, %v101
    %v114 = vsub.f32 %v110, %v112
    %v115 = vsub.f32 %v111, %v113
    %v116 = vmax.f32 %v114, 0.0
    %v117 = vmax.f32 %v115, 0.0
    %v118 = vadd.f32 %v116, 1e-12
    %v119 = vadd.f32 %v117, 1e-12
    %v120 = vrsqrt.pop %v118
    %v121 = vmul.f32 %v120, %v118
    %v122 = vmul.f32 %v121, %v120
    %v123 = vmul.f32 0.5, %v122
    %v124 = vsub.f32 1.5, %v123
    %v125 = vmul.f32 %v120, %v124
    %vm126 = vweird.f32 %v118
    %vm127 = vweird.f32 %v120
    %vm128 = vmor %vm126, %vm127
    %v129 = vsel %vm128, %v120, %v125
    %v130 = vrsqrt.pop %v119
    %v131 = vmul.f32 %v130, %v119
    %v132 = vmul.f32 %v131, %v130
    %v133 = vmul.f32 0.5, %v132
    %v134 = vsub.f32 1.5, %v133
    %v135 = vmul.f32 %v130, %v134
    %vm136 = vweird.f32 %v119
    %vm137 = vweird.f32 %v130
    %vm138 = vmor %vm136, %vm137
    %v139 = vsel %vm138, %v130, %v135
    %v140 = vld [vmem:[%s4] sm:$0x1]
    %v141 = vsub.f32 %v84, %v100
    %v142 = vsub.f32 %v85, %v101
    %v143 = vmul.f32 %v141, %v129
    %v144 = vmul.f32 %v142, %v139
    %v146 = vperm.slane %v140, 0
    %v148 = vmul.f32 %v146, %v143
    %v149 = vmul.f32 %v146, %v144
    %v150 = vld [vmem:[%s5] sm:$0x1]
    %v152 = vperm.slane %v150, 0
    %v154 = vadd.f32 %v148, %v152
    %v155 = vadd.f32 %v149, %v152
    %156 = vst.msk [vmem:[#allocation2] sm:$0xff] %vm86, %v154
    %157 = vst.msk [vmem:[#allocation2 + $0x8] sm:$0xff] %vm86, %v155
    // Predicated region
    $region26: #{tpu_custom_call.1} parent=1 // pred_check
      _
    $region27: #{tpu_custom_call.1} parent=1 // pred_check_branch
      %159 = sbr.rel (0) target = $region29
    $region28: #{tpu_custom_call.1} parent=1 // pred_region
      %161 = vsyncadd [#allocation3], 0
      %s162 = sshll.u32 [#allocation2], 4
      %s163 = int_to_ptr.vmem [resolvable:$true] %s162
      %s164 = sshll.u32 %s6, 4
      %s165 = int_to_ptr.hbm [resolvable:$true] %s164
      %170 = dma.vmem_to_hbm [thread:$0]  %s163, 256, %s165, [#allocation3], 128, 128, 8
    $region29: #{tpu_custom_call.1} parent=1 // pred_fallthru
      _
    // Predicated region
    $region30: #{tpu_custom_call.1} parent=1 // pred_check
      _
    $region31: #{tpu_custom_call.1} parent=1 // pred_check_branch
      %172 = sbr.rel (0) target = $region33
    $region32: #{tpu_custom_call.1} parent=1 // pred_region
      %174 = dma.done [#allocation3], 256
    $region33: #{tpu_custom_call.1} parent=1 // pred_fallthru
      _
    %175 = vsyncpa [#allocation3], 1

</llo_original>
